<compile_context>
chip_gen: v6e
topology: v6e:2x2x1
jax: 0.10.0
libtpu: 0.0.40
codegen_flags: <defaults>
</compile_context>

<pallas_src>
import functools

import jax
import jax.numpy as jnp
from jax.experimental import pallas as pl
from jax.experimental.pallas import tpu as pltpu


def _rope_kernel(x_ref, cos_ref, sin_ref, o_ref, *, half, D):
    """x_ref/o_ref: (BH_TILE, R, L); cos_ref/sin_ref: (R, L) float32.

    Per lane c (within a row of width L, L a multiple of D), the feature index
    within its head is j = c % D.  The rotation partner is
        x[c + half]  for j <  half     (coefficient -sin, folded into sin cache)
        x[c - half]  for half <= j < d (coefficient +sin)
    Pass-through lanes (j >= d) have cos=1, sin=0 in the full-width caches, so
    the partner value there is irrelevant.
    """
    x = x_ref[...]                       # (BH_TILE, R, L), input dtype
    cos = cos_ref[...]                   # (R, L) f32
    sin = sin_ref[...]                   # (R, L) f32, sign-folded, 0 on pass lanes
    L = x.shape[-1]

    if L == 2 * half:
        # Full-width rotation, no packing: a single XLU roll swaps the halves.
        partner = pltpu.roll(x, shift=half, axis=2)
    else:
        r_plus = pltpu.roll(x, shift=L - half, axis=2)    # == x[c + half]
        r_minus = pltpu.roll(x, shift=half, axis=2)       # == x[c - half]
        lane = jax.lax.broadcasted_iota(jnp.int32, (1, L), 1)
        mask = (lane % D) < half                          # (1, L), broadcasts
        partner = jnp.where(mask, r_plus, r_minus)

    # f32 math (cos/sin are f32), cast once at the single lane-dense store.
    out = x * cos[None] + partner * sin[None]
    o_ref[...] = out.astype(o_ref.dtype)


def rope_pallas(x: jax.Array, d: int, base: int = 10000) -> jax.Array:
    """Apply rotary positional embeddings to the first `d` features of x.

    x: [B, H, T, D] float array ('b h t d').  Returns same shape/dtype.
    """
    B, H, T, D = x.shape
    d = int(d)
    assert d > 0 and d % 2 == 0 and d <= D
    half = d // 2
    BH = B * H

    # ---- cos/sin caches (cheap glue, plain JAX), full width D, f32 ----------
    theta = 1.0 / (base ** (jnp.arange(0, d, 2, dtype=jnp.float32) / d))      # (d/2,)
    idx_theta = jnp.arange(T, dtype=jnp.float32)[:, None] * theta[None, :]    # (T, d/2)
    idx_theta2 = jnp.concatenate([idx_theta, idx_theta], axis=1)              # (T, d)
    cos = jnp.cos(idx_theta2)
    sin = jnp.sin(idx_theta2)
    # Fold the neg_half sign into the sin cache: lower half gets -sin.
    sin_signed = jnp.concatenate([-sin[:, :half], sin[:, half:]], axis=1)
    if d < D:
        cos_full = jnp.concatenate([cos, jnp.ones((T, D - d), jnp.float32)], axis=1)
        sin_full = jnp.concatenate([sin_signed, jnp.zeros((T, D - d), jnp.float32)], axis=1)
    else:
        cos_full, sin_full = cos, sin_signed

    # ---- lane packing: row width L = k*D (k heads... actually k time steps
    #      per 128-lane row) so stores are lane-dense when D < 128 ------------
    L = D
    if D < 128 and 128 % D == 0:
        k = 128 // D
        while k > 1 and T % k != 0:
            k //= 2
        L = D * k
    R = (T * D) // L

    xf = x.reshape(BH, R, L)              # free row-major reshape
    cosr = cos_full.reshape(R, L)
    sinr = sin_full.reshape(R, L)

    # ---- BH_TILE: largest divisor of BH whose double-buffered in+out blocks
    #      fit a v7x-safe VMEM budget; keep >= 2 grid steps when possible so
    #      dimension_semantics=('parallel',) can shard across 2 TensorCores ---
    itemsize = jnp.dtype(x.dtype).itemsize
    block_budget = 24 * 1024 * 1024                 # bytes for x-in + out, x2 buffers
    per_head = 4 * T * D * itemsize
    max_tile = max(1, block_budget // per_head)
    bh_tile = 1
    for t in range(1, BH + 1):
        if BH % t == 0 and t <= max_tile:
            bh_tile = t
    if bh_tile == BH and BH >= 2:
        for t in range(BH // 2, 0, -1):
            if BH % t == 0:
                bh_tile = t
                break
    grid = (BH // bh_tile,)

    kernel = functools.partial(_rope_kernel, half=half, D=D)
    out = pl.pallas_call(
        kernel,
        out_shape=jax.ShapeDtypeStruct((BH, R, L), x.dtype),
        grid_spec=pltpu.PrefetchScalarGridSpec(
            num_scalar_prefetch=0,
            grid=grid,
            in_specs=[
                pl.BlockSpec((bh_tile, R, L), lambda i: (i, 0, 0)),
                pl.BlockSpec((R, L), lambda i: (0, 0)),
                pl.BlockSpec((R, L), lambda i: (0, 0)),
            ],
            out_specs=pl.BlockSpec((bh_tile, R, L), lambda i: (i, 0, 0)),
        ),
        compiler_params=pltpu.CompilerParams(
            dimension_semantics=("parallel",),
            vmem_limit_bytes=48 * 1024 * 1024,      # fits v7x's 64 MiB physical
        ),
    )(xf, cosr, sinr)

    return out.reshape(B, H, T, D)


def rope_reference(x: jax.Array, d: int, base: int = 10000) -> jax.Array:
    """Pure-JAX reference mirroring the PyTorch forward."""
    B, H, T, D = x.shape
    xt = jnp.transpose(x, (2, 0, 1, 3))                                    # t b h d
    theta = 1.0 / (base ** (jnp.arange(0, d, 2, dtype=jnp.float32) / d))
    seq_idx = jnp.arange(T, dtype=jnp.float32)
    idx_theta = jnp.einsum("n,d->nd", seq_idx, theta)
    idx_theta2 = jnp.concatenate([idx_theta, idx_theta], axis=1)
    cos = jnp.cos(idx_theta2)[:, None, None, :]
    sin = jnp.sin(idx_theta2)[:, None, None, :]
    x_rope, x_pass = xt[..., :d], xt[..., d:]
    d2 = d // 2
    neg_half = jnp.concatenate([-x_rope[..., d2:], x_rope[..., :d2]], axis=-1)
    x_rope = x_rope * cos + neg_half * sin
    out = jnp.concatenate([x_rope, x_pass], axis=-1)
    return jnp.transpose(out, (1, 2, 0, 3))                                # b h t d


if __name__ == "__main__":
    key = jax.random.PRNGKey(0)

    # Main config: partial rotation, small head_dim (exercises lane packing).
    B, H, T, D = 2, 4, 8, 32   # x: [batch, n_heads, seq_len, head_dim]
    d_rope = 16                # rotate first 16 features, pass through the rest
    x = jax.random.normal(key, (B, H, T, D), dtype=jnp.float32)

    out = jax.block_until_ready(rope_pallas(x, d_rope))
    ref = rope_reference(x, d_rope)
    assert out.shape == (B, H, T, D)
    assert jnp.allclose(out, ref, atol=1e-5, rtol=1e-5), "mismatch vs reference"

    # Secondary config: full-width rotation, D = 128 (single-roll fast path).
    x2 = jax.random.normal(jax.random.PRNGKey(1), (1, 2, 8, 128), dtype=jnp.float32)
    out2 = jax.block_until_ready(rope_pallas(x2, 128))
    ref2 = rope_reference(x2, 128)
    assert jnp.allclose(out2, ref2, atol=1e-5, rtol=1e-5), "mismatch vs reference (full-d)"

    print("KERNEL_OK")
</pallas_src>

<mosaic_0001>
module attributes {stable_mosaic.version = 11 : i64} {
  func.func @_rope_kernel(%arg0: i32, %arg1: memref<4x2x128xf32, #tpu.memory_space<vmem>>, %arg2: memref<2x128xf32, #tpu.memory_space<vmem>>, %arg3: memref<2x128xf32, #tpu.memory_space<vmem>>, %arg4: memref<4x2x128xf32, #tpu.memory_space<vmem>>) attributes {dimension_semantics = [#tpu.dimension_semantics<parallel>], iteration_bounds = array<i64: 2>, scalar_prefetch = 0 : i64, scratch_operands = 0 : i64, tpu.core_type = #tpu.core_type<tc>, window_params = [{transform_indices = @transform_0, window_bounds = array<i64: 4, 2, 128>}, {pipeline_mode = #tpu.pipeline_mode<synchronous>, transform_indices = @transform_1, window_bounds = array<i64: 2, 128>}, {pipeline_mode = #tpu.pipeline_mode<synchronous>, transform_indices = @transform_2, window_bounds = array<i64: 2, 128>}, {transform_indices = @transform_3, window_bounds = array<i64: 4, 2, 128>}]} {
    %c0 = arith.constant 0 : index
    %c0_0 = arith.constant 0 : index
    %c0_1 = arith.constant 0 : index
    %0 = vector.load %arg1[%c0, %c0_0, %c0_1] : memref<4x2x128xf32, #tpu.memory_space<vmem>>, vector<4x2x128xf32>
    %c0_2 = arith.constant 0 : index
    %c0_3 = arith.constant 0 : index
    %1 = vector.load %arg2[%c0_2, %c0_3] : memref<2x128xf32, #tpu.memory_space<vmem>>, vector<2x128xf32>
    %c0_4 = arith.constant 0 : index
    %c0_5 = arith.constant 0 : index
    %2 = vector.load %arg3[%c0_4, %c0_5] : memref<2x128xf32, #tpu.memory_space<vmem>>, vector<2x128xf32>
    %c120_i32 = arith.constant 120 : i32
    %3 = tpu.dynamic_rotate %0 by %c120_i32 dim 2 : vector<4x2x128xf32>, i32 -> vector<4x2x128xf32>
    %c8_i32 = arith.constant 8 : i32
    %4 = tpu.dynamic_rotate %0 by %c8_i32 dim 2 : vector<4x2x128xf32>, i32 -> vector<4x2x128xf32>
    %5 = tpu.iota {dimensions = array<i32: 1>} : vector<1x128xi32>
    %c32_i32 = arith.constant 32 : i32
    %c0_i32 = arith.constant 0 : i32
    %6 = arith.cmpi eq, %c32_i32, %c0_i32 : i32
    %c1_i32 = arith.constant 1 : i32
    %7 = arith.select %6, %c1_i32, %c32_i32 : i32
    %8 = vector.broadcast %7 : i32 to vector<1x128xi32>
    %9 = arith.remsi %5, %8 : vector<1x128xi32>
    %c0_i32_6 = arith.constant 0 : i32
    %10 = vector.broadcast %c0_i32_6 : i32 to vector<1x128xi32>
    %11 = arith.cmpi ne, %9, %10 : vector<1x128xi32>
    %c0_i32_7 = arith.constant 0 : i32
    %12 = vector.broadcast %c0_i32_7 : i32 to vector<1x128xi32>
    %13 = arith.cmpi slt, %9, %12 : vector<1x128xi32>
    %c0_i32_8 = arith.constant 0 : i32
    %14 = arith.cmpi slt, %7, %c0_i32_8 : i32
    %15 = vector.broadcast %14 : i1 to vector<1x128xi1>
    %16 = vector.broadcast %15 : vector<1x128xi1> to vector<1x128xi1>
    %17 = arith.xori %13, %16 : vector<1x128xi1>
    %18 = arith.andi %17, %11 : vector<1x128xi1>
    %19 = vector.broadcast %7 : i32 to vector<1x128xi32>
    %20 = arith.addi %9, %19 : vector<1x128xi32>
    %21 = arith.select %18, %20, %9 : vector<1x128xi1>, vector<1x128xi32>
    %c8_i32_9 = arith.constant 8 : i32
    %22 = vector.broadcast %c8_i32_9 : i32 to vector<1x128xi32>
    %23 = arith.cmpi slt, %21, %22 : vector<1x128xi32>
    %24 = vector.shape_cast %23 : vector<1x128xi1> to vector<1x1x128xi1>
    %25 = vector.broadcast %24 : vector<1x1x128xi1> to vector<4x2x128xi1>
    %26 = arith.select %25, %3, %4 : vector<4x2x128xi1>, vector<4x2x128xf32>
    %27 = vector.shape_cast %1 : vector<2x128xf32> to vector<1x2x128xf32>
    %28 = vector.broadcast %27 : vector<1x2x128xf32> to vector<4x2x128xf32>
    %29 = arith.mulf %0, %28 : vector<4x2x128xf32>
    %30 = vector.shape_cast %2 : vector<2x128xf32> to vector<1x2x128xf32>
    %31 = vector.broadcast %30 : vector<1x2x128xf32> to vector<4x2x128xf32>
    %32 = arith.mulf %26, %31 : vector<4x2x128xf32>
    %33 = arith.addf %29, %32 : vector<4x2x128xf32>
    %c0_10 = arith.constant 0 : index
    %c0_11 = arith.constant 0 : index
    %c0_12 = arith.constant 0 : index
    %34 = vector.load %arg4[%c0_10, %c0_11, %c0_12] : memref<4x2x128xf32, #tpu.memory_space<vmem>>, vector<4x2x128xf32>
    tpu.vector_store %arg4[%c0_10, %c0_11, %c0_12], %33 {strides = array<i32>} : memref<4x2x128xf32, #tpu.memory_space<vmem>>, vector<4x2x128xf32>,
    return
  }
  func.func @transform_0(%arg0: i32) -> (i32, i32, i32) {
    %c0_i32 = arith.constant 0 : i32
    %c0_i32_0 = arith.constant 0 : i32
    %c0_i32_1 = arith.constant 0 : i32
    return %arg0, %c0_i32, %c0_i32_0 : i32, i32, i32
  }
  func.func @transform_1(%arg0: i32) -> (i32, i32) {
    %c0_i32 = arith.constant 0 : i32
    %c0_i32_0 = arith.constant 0 : i32
    %c0_i32_1 = arith.constant 0 : i32
    return %c0_i32, %c0_i32_0 : i32, i32
  }
  func.func @transform_2(%arg0: i32) -> (i32, i32) {
    %c0_i32 = arith.constant 0 : i32
    %c0_i32_0 = arith.constant 0 : i32
    %c0_i32_1 = arith.constant 0 : i32
    return %c0_i32, %c0_i32_0 : i32, i32
  }
  func.func @transform_3(%arg0: i32) -> (i32, i32, i32) {
    %c0_i32 = arith.constant 0 : i32
    %c0_i32_0 = arith.constant 0 : i32
    %c0_i32_1 = arith.constant 0 : i32
    return %arg0, %c0_i32, %c0_i32_0 : i32, i32, i32
  }
}

</mosaic_0001>

<llo_original>
// kernel: tpu_custom_call.1
$region0: #{tpu_custom_call.1}
  #allocation0 [shape = 'u32[]', space=smem, size = 0x4, offset = 0x4, fixed_abs, tag = 'smem constant byte address 0x4 - core index']
  #allocation1 [shape = 'u32[144,128]{1,0:T(1,128)}', space=vmem, size = 0x12000, scoped, tag = 'internal scratch']
  %s0 = inlined_call_operand.hbm [shape: f32[8,2,128], index: 0, kind: input, shape index: {}]
  %s1 = inlined_call_operand.hbm [shape: f32[2,128], index: 1, kind: input, shape index: {}]
  %s2 = inlined_call_operand.vmem [shape: f32[2,128], index: 2, kind: input, shape index: {}]
  %s3 = inlined_call_operand.hbm [shape: f32[8,2,128], index: 3, kind: output, shape index: {}]
  %s4 = sld [smem:[#allocation0]]
  $region53: #{tpu_custom_call.1} parent=0
    _
  %s6 = ssub.s32 1, %s4
  %s7 = scalar_select 0, %s6, %s4
  $region1: #{tpu_custom_call.1} parent=0
    #allocation2 [shape = 'u8[8192]{0}', space=vmem, size = 0x2000, scoped, tag = 'input window, operand 0']
    #allocation3 [shape = 's32[2]{0}', space=sflag, size = 0x8, scoped, tag = 'scoped memory for tpu_custom_call.1']
    #allocation4 [shape = 's32[2]{0}', space=sflag, size = 0x8, scoped, tag = 'scoped memory for tpu_custom_call.1']
    #allocation5 [shape = 'u8[1024]{0}', space=vmem, size = 0x400, scoped, tag = 'input window, operand 1, single buffered']
    #allocation6 [shape = 's32[1]{0}', space=sflag, size = 0x4, scoped, tag = 'scoped memory for tpu_custom_call.1']
    #allocation7 [shape = 'u8[8192]{0}', space=vmem, size = 0x2000, scoped, tag = 'output window, operand 0']
    %8 = vsyncpa [#allocation3], 0
    %s9 = scalar_lea.sflag [#allocation3], 1
    %10 = vsyncpa %s9, 0
    %11 = vsyncpa [#allocation6], 0
    %12 = vsyncpa [#allocation4], 0
    %s13 = scalar_lea.sflag [#allocation4], 1
    %14 = vsyncpa %s13, 0
    loop: start=0, step=1, limit=4
    $region2: #{tpu_custom_call.1} parent=1 // loop_pre_header
      _
    $region3: #{tpu_custom_call.1} parent=1 // loop_header
      %s16 = sphi 0, %s20
      %p17 = scmp.ge.s32.totalorder %s16, 4
      %s26 = sphi 0, %s28
      %s29 = sphi 0, %s26
      %s30 = sphi 0, %s29
      %s46 = sphi 0, %s30
      %s50 = sphi 0, %s50
      %s52 = sphi 0, %s50
      %s53 = sphi 0, %s52
      %s67 = sphi 0, %s53
      %s71 = sphi 0, %s71
      %s73 = sphi 0, %s71
      %s74 = sphi 0, %s73
      %s88 = sphi 0, %s74
      %s94 = sphi 0, %s96
      %s97 = sphi 0, %s94
      %s98 = sphi 0, %s97
      %s114 = sphi 0, %s98
    $region4: #{tpu_custom_call.1} parent=1 // loop_header_branch
      %19 = sbr.rel (%p17) target = $region8
    $region5: #{tpu_custom_call.1} parent=1 // loop_body
      %s21 = ssub.s32 %s16, 1
      %s22 = ssub.s32 %s16, 2
      %s23 = sadd.s32 %s16, 1
      %s24 = ssub.s32 %s16, %s23
      %p25 = scmp.eq.s32.totalorder %s24, 0
      %s27 = sadd.s32 %s26, 1
      %s28 = scalar_select %p25, %s26, %s27
      %p31 = pneg %p25
      %p32 = scmp.eq.s32.totalorder %s16, 1
      %p33 = por %p31, %p32
      %p34 = scmp.ne.s32.totalorder %s26, %s29
      %p35 = scmp.eq.s32.totalorder %s16, 0
      %p36 = por %p34, %p35
      %p37 = scmp.ne.s32.totalorder %s26, %s29
      %p38 = scmp.eq.s32.totalorder %s21, 1
      %p39 = por %p37, %p38
      %p40 = scmp.ne.s32.totalorder %s29, %s30
      %p41 = scmp.eq.s32.totalorder %s21, 0
      %p42 = por %p40, %p41
      %p43 = scmp.ne.s32.totalorder %s29, %s30
      %p44 = scmp.eq.s32.totalorder %s22, 1
      %p45 = por %p43, %p44
      %p47 = scmp.ne.s32.totalorder %s30, %s46
      %p48 = scmp.eq.s32.totalorder %s22, 0
      %p49 = por %p47, %p48
      %s51 = sadd.s32 %s50, 1
      %p54 = scmp.eq.s32.totalorder %s16, 1
      %p55 = scmp.ne.s32.totalorder %s50, %s52
      %p56 = scmp.eq.s32.totalorder %s16, 0
      %p57 = por %p55, %p56
      %p58 = scmp.ne.s32.totalorder %s50, %s52
      %p59 = scmp.eq.s32.totalorder %s21, 1
      %p60 = por %p58, %p59
      %p61 = scmp.ne.s32.totalorder %s52, %s53
      %p62 = scmp.eq.s32.totalorder %s21, 0
      %p63 = por %p61, %p62
      %p64 = scmp.ne.s32.totalorder %s52, %s53
      %p65 = scmp.eq.s32.totalorder %s22, 1
      %p66 = por %p64, %p65
      %p68 = scmp.ne.s32.totalorder %s53, %s67
      %p69 = scmp.eq.s32.totalorder %s22, 0
      %p70 = por %p68, %p69
      %s72 = sadd.s32 %s71, 1
      %p75 = scmp.eq.s32.totalorder %s16, 1
      %p76 = scmp.ne.s32.totalorder %s71, %s73
      %p77 = scmp.eq.s32.totalorder %s16, 0
      %p78 = por %p76, %p77
      %p79 = scmp.ne.s32.totalorder %s71, %s73
      %p80 = scmp.eq.s32.totalorder %s21, 1
      %p81 = por %p79, %p80
      %p82 = scmp.ne.s32.totalorder %s73, %s74
      %p83 = scmp.eq.s32.totalorder %s21, 0
      %p84 = por %p82, %p83
      %p85 = scmp.ne.s32.totalorder %s73, %s74
      %p86 = scmp.eq.s32.totalorder %s22, 1
      %p87 = por %p85, %p86
      %p89 = scmp.ne.s32.totalorder %s74, %s88
      %p90 = scmp.eq.s32.totalorder %s22, 0
      %p91 = por %p89, %p90
      %s92 = ssub.s32 %s16, %s23
      %p93 = scmp.eq.s32.totalorder %s92, 0
      %s95 = sadd.s32 %s94, 1
      %s96 = scalar_select %p93, %s94, %s95
      %p99 = pneg %p93
      %p100 = scmp.eq.s32.totalorder %s16, 1
      %p101 = por %p99, %p100
      %p102 = scmp.ne.s32.totalorder %s94, %s97
      %p103 = scmp.eq.s32.totalorder %s16, 0
      %p104 = por %p102, %p103
      %p105 = scmp.ne.s32.totalorder %s94, %s97
      %p106 = scmp.eq.s32.totalorder %s21, 1
      %p107 = por %p105, %p106
      %p108 = scmp.ne.s32.totalorder %s97, %s98
      %p109 = scmp.eq.s32.totalorder %s21, 0
      %p110 = por %p108, %p109
      %p111 = scmp.ne.s32.totalorder %s97, %s98
      %p112 = scmp.eq.s32.totalorder %s22, 1
      %p113 = por %p111, %p112
      %p115 = scmp.ne.s32.totalorder %s98, %s114
      %p116 = scmp.eq.s32.totalorder %s22, 0
      %p117 = por %p115, %p116
      %p118 = scmp.le.s32.totalorder 1, %s16
      %p119 = scmp.lt.s32.totalorder %s16, 3
      %p120 = pnand %p118, %p119
      %p121 = pneg %p120
      // Predicated region
      $region9: #{tpu_custom_call.1} parent=5 // pred_check
        _
      $region10: #{tpu_custom_call.1} parent=5 // pred_check_branch
        %123 = sbr.rel (%p120) target = $region12
      $region11: #{tpu_custom_call.1} parent=5 // pred_region
        %s124 = ssub.s32 %s16, 1
        // Predicated region
        $region13: #{tpu_custom_call.1} parent=11 // pred_check
          %p125 = pneg %p63
        $region14: #{tpu_custom_call.1} parent=11 // pred_check_branch
          %127 = sbr.rel (%p125) target = $region16
        $region15: #{tpu_custom_call.1} parent=11 // pred_region
          %s129 = ssub.s32 32, 32
          %130 = vsyncadd [#allocation6], %s129
          %s132 = sshll.u32 [#allocation5], 4
          %s133 = int_to_ptr.vmem [resolvable:$true] %s132
          %135 = dma.hbm_to_vmem [thread:$0]  %s1, 32, %s133, [#allocation6]
        $region16: #{tpu_custom_call.1} parent=11 // pred_fallthru
          _
        // Predicated region
        $region17: #{tpu_custom_call.1} parent=11 // pred_check
          %p136 = pneg %p84
        $region18: #{tpu_custom_call.1} parent=11 // pred_check_branch
          %138 = sbr.rel (%p136) target = $region20
        $region19: #{tpu_custom_call.1} parent=11 // pred_region
          _
        $region20: #{tpu_custom_call.1} parent=11 // pred_fallthru
          _
      $region12: #{tpu_custom_call.1} parent=5 // pred_fallthru
        _
      %p139 = scmp.lt.s32.totalorder %s16, 2
      // Predicated region
      $region21: #{tpu_custom_call.1} parent=5 // pred_check
        %p140 = pneg %p139
      $region22: #{tpu_custom_call.1} parent=5 // pred_check_branch
        %142 = sbr.rel (%p140) target = $region24
      $region23: #{tpu_custom_call.1} parent=5 // pred_region
        // Predicated region
        $region25: #{tpu_custom_call.1} parent=23 // pred_check
          %p143 = pneg %p36
        $region26: #{tpu_custom_call.1} parent=23 // pred_check_branch
          %145 = sbr.rel (%p143) target = $region28
        $region27: #{tpu_custom_call.1} parent=23 // pred_region
          %s146 = sand.u32 %s26, 1
          %s147 = scalar_lea.sflag [#allocation3], %s146
          %s148 = sand.u32 %s26, 1
          %s149 = smul.addr %s148, 8
          %s150 = scalar_lea.vmem [#allocation2], %s149
          %s151 = smul.u32 4, %s16
          %s153 = ssub.s32 128, 128
          %154 = vsyncadd %s147, %s153
          %s155 = smul.addr %s151, 32
          %s156 = scalar_lea.hbm %s0, %s155
          %s157 = sshll.u32 %s150, 4
          %s158 = int_to_ptr.vmem [resolvable:$true] %s157
          %163 = dma.hbm_to_vmem [thread:$0]  %s156, 128, %s158, %s147, 32, 32, 2
        $region28: #{tpu_custom_call.1} parent=23 // pred_fallthru
          _
      $region24: #{tpu_custom_call.1} parent=5 // pred_fallthru
        _
      %p164 = scmp.le.s32.totalorder 1, %s16
      %p165 = scmp.lt.s32.totalorder %s16, 3
      %p166 = pnand %p164, %p165
      %p167 = pneg %p166
      // Predicated region
      $region29: #{tpu_custom_call.1} parent=5 // pred_check
        _
      $region30: #{tpu_custom_call.1} parent=5 // pred_check_branch
        %169 = sbr.rel (%p166) target = $region32
      $region31: #{tpu_custom_call.1} parent=5 // pred_region
        %s170 = ssub.s32 %s16, 1
        %s171 = sand.u32 %s29, 1
        %s172 = scalar_lea.sflag [#allocation3], %s171
        %s173 = sand.u32 %s29, 1
        %s174 = smul.addr %s173, 8
        %s175 = scalar_lea.vmem [#allocation2], %s174
        // Predicated region
        $region33: #{tpu_custom_call.1} parent=31 // pred_check
          %p176 = pneg %p42
        $region34: #{tpu_custom_call.1} parent=31 // pred_check_branch
          %178 = sbr.rel (%p176) target = $region36
        $region35: #{tpu_custom_call.1} parent=31 // pred_region
          %179 = dma.done %s172, 128
        $region36: #{tpu_custom_call.1} parent=31 // pred_fallthru
          _
        // Predicated region
        $region37: #{tpu_custom_call.1} parent=31 // pred_check
          %p180 = pneg %p63
        $region38: #{tpu_custom_call.1} parent=31 // pred_check_branch
          %182 = sbr.rel (%p180) target = $region40
        $region39: #{tpu_custom_call.1} parent=31 // pred_region
          %183 = dma.done [#allocation6], 32
        $region40: #{tpu_custom_call.1} parent=31 // pred_fallthru
          _
        %s184 = sand.u32 %s29, 1
        %s185 = scalar_lea.sflag [#allocation3], %s184
        %s186 = sand.u32 %s29, 1
        %s187 = smul.addr %s186, 8
        %s188 = scalar_lea.vmem [#allocation2], %s187
        %p189 = pneg %p42
        %p190 = pneg %p39
        %p191 = pneg %p63
        %p192 = pneg %p60
        %p193 = pneg %p84
        %p194 = pneg %p81
        %p195 = pneg %p110
        %p196 = pneg %p107
        %s197 = sand.u32 %s97, 1
        %s198 = scalar_lea.sflag [#allocation4], %s197
        %s199 = sand.u32 %s97, 1
        %s200 = smul.addr %s199, 8
        %s201 = scalar_lea.vmem [#allocation7], %s200
        %s202 = smul.u32 4, %s21
        %s203 = smul.u32 4, %s21
        %v204 = vld [vmem:[%s175] sm:$0x3]
        %v205 = vld [vmem:[%s175 + $0x2] sm:$0x3]
        %v206 = vld [vmem:[%s175 + $0x4] sm:$0x3]
        %v207 = vld [vmem:[%s175 + $0x6] sm:$0x3]
        %v208 = vld [vmem:[#allocation5] sm:$0x3]
        %v209 = vld [vmem:[%s2] sm:$0x3]
        %210 = vrot.lane.b32.xlu0 %v204, 120
        %v211 = vpop.permute.xlu0 %210
        %212 = vrot.lane.b32.xlu0 %v205, 120
        %v213 = vpop.permute.xlu0 %212
        %214 = vrot.lane.b32.xlu0 %v206, 120
        %v215 = vpop.permute.xlu0 %214
        %216 = vrot.lane.b32.xlu0 %v207, 120
        %v217 = vpop.permute.xlu0 %216
        %218 = vrot.lane.b32.xlu0 %v204, 8
        %v219 = vpop.permute.xlu0 %218
        %220 = vrot.lane.b32.xlu0 %v205, 8
        %v221 = vpop.permute.xlu0 %220
        %222 = vrot.lane.b32.xlu0 %v206, 8
        %v223 = vpop.permute.xlu0 %222
        %224 = vrot.lane.b32.xlu0 %v207, 8
        %v225 = vpop.permute.xlu0 %224
        %v226 = vlaneseq
        %v227 = vand.u32 %v226, 127
        %vm228 = vcmp.lt.s32.totalorder %v227, 0
        %v229 = vsub.s32 0, %v227
        %v230 = vsel %vm228, %v229, %v227
        %v231 = vshrl.u32 %v230, 5
        %v232 = vand.u32 %v230, 31
        %v233 = vsub.s32 0, %v232
        %v234 = vsel %vm228, %v233, %v232
        %vm235 = vcmp.ne.s32.totalorder %v234, 0
        %vm236 = vcmp.lt.s32.totalorder %v234, 0
        %vm237 = vmand %vm236, %vm235
        %v238 = vadd.s32 %v234, 32
        %v239 = vsel %vm237, %v238, %v234
        %vm240 = vcmp.lt.s32.totalorder %v239, 8
        %v241 = vsel %vm240, 1, 0
        %vm242 = vcmp.eq.s32.totalorder %v241, 1
        %v243 = vsel %vm242, %v211, %v219
        %v244 = vsel %vm242, %v213, %v221
        %v245 = vsel %vm242, %v215, %v223
        %v246 = vsel %vm242, %v217, %v225
        %v247 = vmul.f32 %v204, %v208
        %v248 = vmul.f32 %v205, %v208
        %v249 = vmul.f32 %v206, %v208
        %v250 = vmul.f32 %v207, %v208
        %v251 = vmul.f32 %v243, %v209
        %v252 = vmul.f32 %v244, %v209
        %v253 = vmul.f32 %v245, %v209
        %v254 = vmul.f32 %v246, %v209
        %v255 = vadd.f32 %v247, %v251
        %v256 = vadd.f32 %v248, %v252
        %v257 = vadd.f32 %v249, %v253
        %v258 = vadd.f32 %v250, %v254
        %259 = vst [vmem:[%s201] sm:$0x3] %v255
        %260 = vst [vmem:[%s201 + $0x2] sm:$0x3] %v256
        %261 = vst [vmem:[%s201 + $0x4] sm:$0x3] %v257
        %262 = vst [vmem:[%s201 + $0x6] sm:$0x3] %v258
        %s263 = sand.u32 %s97, 1
        %s264 = scalar_lea.sflag [#allocation4], %s263
        %s265 = sand.u32 %s97, 1
        %s266 = smul.addr %s265, 8
        %s267 = scalar_lea.vmem [#allocation7], %s266
        // Predicated region
        $region41: #{tpu_custom_call.1} parent=31 // pred_check
          %p268 = pneg %p107
        $region42: #{tpu_custom_call.1} parent=31 // pred_check_branch
          %270 = sbr.rel (%p268) target = $region44
        $region43: #{tpu_custom_call.1} parent=31 // pred_region
          %s271 = smul.u32 4, %s21
          %s273 = ssub.s32 128, 128
          %274 = vsyncadd %s264, %s273
          %s275 = smul.addr %s271, 32
          %s276 = scalar_lea.hbm %s3, %s275
          %s277 = sshll.u32 %s267, 4
          %s278 = int_to_ptr.vmem [resolvable:$true] %s277
          %283 = dma.vmem_to_hbm [thread:$0]  %s278, 128, %s276, %s264, 32, 32, 2
        $region44: #{tpu_custom_call.1} parent=31 // pred_fallthru
          _
      $region32: #{tpu_custom_call.1} parent=5 // pred_fallthru
        _
      %p284 = scmp.le.s32.totalorder 2, %s16
      // Predicated region
      $region45: #{tpu_custom_call.1} parent=5 // pred_check
        %p285 = pneg %p284
      $region46: #{tpu_custom_call.1} parent=5 // pred_check_branch
        %287 = sbr.rel (%p285) target = $region48
      $region47: #{tpu_custom_call.1} parent=5 // pred_region
        %s288 = ssub.s32 %s16, 2
        // Predicated region
        $region49: #{tpu_custom_call.1} parent=47 // pred_check
          %p289 = pneg %p113
        $region50: #{tpu_custom_call.1} parent=47 // pred_check_branch
          %291 = sbr.rel (%p289) target = $region52
        $region51: #{tpu_custom_call.1} parent=47 // pred_region
          %s292 = sand.u32 %s98, 1
          %s293 = scalar_lea.sflag [#allocation4], %s292
          %s294 = sand.u32 %s98, 1
          %s295 = smul.addr %s294, 8
          %s296 = scalar_lea.vmem [#allocation7], %s295
          %297 = dma.done %s293, 128
        $region52: #{tpu_custom_call.1} parent=47 // pred_fallthru
          _
      $region48: #{tpu_custom_call.1} parent=5 // pred_fallthru
        _
    $region6: #{tpu_custom_call.1} parent=1 // loop_footer
      %s20 = sadd.s32 1, %s16
    $region7: #{tpu_custom_call.1} parent=1 // loop_footer_branch
      %15 = sbr.rel target = $region3
    $region8: #{tpu_custom_call.1} parent=1 // loop_exit
      _
    %298 = vsyncpa [#allocation3], 1
    %s299 = scalar_lea.sflag [#allocation3], 1
    %300 = vsyncpa %s299, 1
    %301 = vsyncpa [#allocation6], 1
    %302 = vsyncpa [#allocation4], 1
    %s303 = scalar_lea.sflag [#allocation4], 1
    %304 = vsyncpa %s303, 1

</llo_original>
